<compile_context>
chip_gen: v5e
topology: v5e:2x2
jax: 0.10.0
libtpu: 0.0.40
codegen_flags: <defaults>
</compile_context>

<pallas_src>
import functools
import math

import jax
import jax.numpy as jnp
from jax.experimental import pallas as pl
from jax.experimental.pallas import tpu as pltpu

_LANE = 128
_SUBLANE = 8


def _round_up(x, m):
    return (x + m - 1) // m * m


def _cdiv(a, b):
    return (a + b - 1) // b


def _tpu_config():
    """Per-generation tuning: (vmem_limit_bytes, tile_budget_bytes, target_rows, min_m_tiles)."""
    kind = ""
    try:
        kind = jax.devices()[0].device_kind.lower()
    except Exception:
        pass
    if "v7" in kind or "7x" in kind:
        # 64 MiB physical VMEM, 2 TensorCores per chip -> want >=2 M tiles.
        return 48 * 1024 * 1024, 40 * 1024 * 1024, 1024, 2
    if "v5 lite" in kind or "v5e" in kind or "v5lite" in kind:
        return 96 * 1024 * 1024, 64 * 1024 * 1024, 512, 1
    if "v6" in kind:
        return 96 * 1024 * 1024, 64 * 1024 * 1024, 1024, 1
    # Unknown generation: conservative defaults.
    return 64 * 1024 * 1024, 40 * 1024 * 1024, 512, 1


def _log_softmax_rows(logits):
    """Row-wise log_softmax in f32.  Padded class columns carry a -1e30 bias, so
    exp() underflows to exactly 0 and they never leak into the denominator."""
    m = jnp.max(logits, axis=-1, keepdims=True)
    shifted = logits - m
    lse = jnp.log(jnp.sum(jnp.exp(shifted), axis=-1, keepdims=True))
    return shifted - lse


def _vote_avg_kernel(flat_ref, w_ref, b_ref, avg_ref, o_ref, acc_ref, *,
                     apply_log_softmax):
    """Grid = (M tiles over B*K crop rows [parallel], D-reduction tiles [arbitrary]).

    flat_ref: (TM, TD) bf16   w_ref: (TD, NCp) bf16   b_ref: (1, NCp) f32
    avg_ref:  (TB, TM) f32    o_ref: (TB, NCp) f32    acc_ref: (TM, NCp) f32
    """
    d_idx = pl.program_id(1)

    @pl.when(d_idx == 0)
    def _init():
        acc_ref[...] = jnp.zeros_like(acc_ref)

    # (TM, TD) x (TD, NCp) on the MXU, f32 accumulation.
    acc_ref[...] += jnp.dot(flat_ref[...], w_ref[...],
                            preferred_element_type=jnp.float32)

    @pl.when(d_idx == pl.num_programs(1) - 1)
    def _finalize():
        logits = acc_ref[...] + b_ref[...]                       # (TM, NCp) f32
        if apply_log_softmax:                                    # nn.LogSoftmax(dim=1)
            logits = _log_softmax_rows(logits)
        # .view(B, K, NC).mean(1) as a tiny precomputed block-averaging matmul.
        o_ref[...] = jnp.dot(avg_ref[...], logits,
                             preferred_element_type=jnp.float32).astype(o_ref.dtype)


def _vote_rows_kernel(flat_ref, w_ref, b_ref, o_ref, acc_ref, *,
                      apply_log_softmax):
    """Same as _vote_avg_kernel but rows are already one-per-image (K == 1,
    e.g. the voting_type='soft' pre-averaged path)."""
    d_idx = pl.program_id(1)

    @pl.when(d_idx == 0)
    def _init():
        acc_ref[...] = jnp.zeros_like(acc_ref)

    acc_ref[...] += jnp.dot(flat_ref[...], w_ref[...],
                            preferred_element_type=jnp.float32)

    @pl.when(d_idx == pl.num_programs(1) - 1)
    def _finalize():
        logits = acc_ref[...] + b_ref[...]
        if apply_log_softmax:
            logits = _log_softmax_rows(logits)
        o_ref[...] = logits.astype(o_ref.dtype)


def crops_vote(flat, w, b, *, voting_type="hard_softmax", td_max=2048):
    """flat: (B, K, D) flattened crops; w: (D, NC); b: (NC,) -> (B, NC) voted logits."""
    assert voting_type in ("hard_softmax", "soft")
    B, K, D = flat.shape
    NC = w.shape[1]
    apply_log_softmax = voting_type == "hard_softmax"

    vmem_limit, tile_budget, target_rows, min_m_tiles = _tpu_config()

    # voting_type='soft': mean over K commutes with the linear layer, so average
    # the crop rows up front -> K x fewer MXU flops, K x smaller accumulator RMW,
    # K x less crop HBM traffic.  (NOT valid for 'hard_softmax'.)
    if not apply_log_softmax and K > 1:
        flat = jnp.mean(flat.astype(jnp.float32), axis=1, keepdims=True)
        K = 1
    use_avg = K > 1

    # bf16 crop/weight stream, cast BEFORE padding (halves padded-copy traffic).
    flat = flat.astype(jnp.bfloat16)
    w = w.astype(jnp.bfloat16)
    b = b.astype(jnp.float32)

    # Lane-dense output: pad classes up to a multiple of 128.  Weight pad columns
    # are zero; bias pad is -1e30 (f32) under log_softmax so no in-kernel masking.
    NCp = _round_up(NC, _LANE)
    if NCp != NC:
        w = jnp.pad(w, ((0, 0), (0, NCp - NC)))
        pad_val = -1e30 if apply_log_softmax else 0.0
        b = jnp.pad(b, (0, NCp - NC), constant_values=pad_val)

    # D-reduction tiling: biggest TD (multiple of 128, <= td_max) that divides
    # the padded D with minimal extra padding.
    Dp0 = _round_up(D, _LANE)
    TD = _round_up(_cdiv(Dp0, _cdiv(Dp0, td_max)), _LANE)

    # M tiling: TB images (TM = TB*K rows) per grid step.
    m_align = _SUBLANE // math.gcd(_SUBLANE, K)      # smallest TB with TB*K % 8 == 0
    tb_single = _round_up(B, m_align)                # whole (padded) batch, one tile
    tb_multi = max(_SUBLANE, _round_up(max(1, target_rows // K), _SUBLANE))
    if tb_single <= tb_multi:
        TB = tb_single
        if min_m_tiles > 1:                          # v7x: feed both TensorCores
            tb_split = _round_up(_cdiv(B, min_m_tiles), _SUBLANE)
            if tb_split < tb_single:
                TB = tb_split
    else:
        TB = tb_multi

    # Shrink tiles until double-buffered inputs + f32 accumulator fit the budget.
    def _tile_vmem_bytes(tb, td):
        tm = tb * K
        n = (2 * tm * td * 2            # crop rows (bf16, double-buffered)
             + 2 * td * NCp * 2         # classifier weight (bf16, double-buffered)
             + 2 * NCp * 4              # bias
             + tm * NCp * 4             # f32 accumulator
             + 2 * tb * NCp * 4)        # voted output (double-buffered)
        if use_avg:
            n += 2 * tb * tm * 4        # block-averaging matrix
        return n

    tb_floor = _round_up(min(B, _SUBLANE), m_align)
    while _tile_vmem_bytes(TB, TD) > tile_budget and TD > _LANE:
        TD = max(_LANE, _round_up(TD // 2, _LANE))
    while _tile_vmem_bytes(TB, TD) > tile_budget and TB > tb_floor:
        nxt = TB // 2
        TB = max(tb_floor,
                 _round_up(nxt, _SUBLANE) if nxt >= _SUBLANE
                 else _round_up(max(1, nxt), m_align))

    TM = TB * K
    Bp = _round_up(B, TB)
    Dp = _round_up(Dp0, TD)

    # Pad (already bf16) to tile multiples; zero rows/features are inert in the dot.
    if Bp != B or Dp != D:
        flat = jnp.pad(flat, ((0, Bp - B), (0, 0), (0, Dp - D)))
    if Dp != D:
        w = jnp.pad(w, ((0, Dp - D), (0, 0)))

    flat2d = flat.reshape(Bp * K, Dp)
    b2d = b.reshape(1, NCp)

    grid = (Bp // TB, Dp // TD)
    in_specs = [
        pl.BlockSpec((TM, TD), lambda i, k: (i, k)),      # crop rows
        pl.BlockSpec((TD, NCp), lambda i, k: (k, 0)),     # classifier weight
        pl.BlockSpec((1, NCp), lambda i, k: (0, 0)),      # bias (fetched once)
    ]
    inputs = [flat2d, w, b2d]
    if use_avg:
        # (TB, TM) block-averaging matrix implementing .view(B, K, NC).mean(1);
        # identical for every M tile, precomputed here (hoisted out of the epilogue).
        avg = ((jnp.arange(TM, dtype=jnp.int32)[None, :] // K
                == jnp.arange(TB, dtype=jnp.int32)[:, None])
               .astype(jnp.float32) / K)
        in_specs.append(pl.BlockSpec((TB, TM), lambda i, k: (0, 0)))
        inputs.append(avg)
        kernel = functools.partial(_vote_avg_kernel,
                                   apply_log_softmax=apply_log_softmax)
    else:
        kernel = functools.partial(_vote_rows_kernel,
                                   apply_log_softmax=apply_log_softmax)

    out = pl.pallas_call(
        kernel,
        out_shape=jax.ShapeDtypeStruct((Bp, NCp), jnp.float32),
        grid_spec=pltpu.PrefetchScalarGridSpec(
            num_scalar_prefetch=0,
            grid=grid,
            in_specs=in_specs,
            out_specs=pl.BlockSpec((TB, NCp), lambda i, k: (i, 0)),
            scratch_shapes=[pltpu.VMEM((TM, NCp), jnp.float32)],
        ),
        compiler_params=pltpu.CompilerParams(
            dimension_semantics=("parallel", "arbitrary"),
            vmem_limit_bytes=vmem_limit,
        ),
    )(*inputs)
    return out[:B, :NC]


def gen_crops(x, num_crops, crop_w, crop_h, key):
    """Glue: random crop extraction (gather) in plain JAX. Returns (B,K,C,ch,cw).

    The gather is exact in any dtype, so casting x to bf16 before this call
    yields bit-identical bf16 crops while halving the materialized HBM traffic.
    """
    B, C, H, W = x.shape
    ky, kx = jax.random.split(key)
    oy = jax.random.randint(ky, (B, num_crops), 0, H - crop_h + 1)
    ox = jax.random.randint(kx, (B, num_crops), 0, W - crop_w + 1)

    def one_crop(img, y0, x0):
        return jax.lax.dynamic_slice(img, (0, y0, x0), (C, crop_h, crop_w))

    return jax.vmap(                                    # over batch
        jax.vmap(one_crop, in_axes=(None, 0, 0)),       # over crops
        in_axes=(0, 0, 0))(x, oy, ox)


class RandomCropsWrapperPallas:
    """Pallas port of RandomCropsWrapper (combine=False, num_samples=1,
    voting_type='hard_softmax' or 'soft'; inner_model = linear classifier)."""

    def __init__(self, num_crops, crop_w, crop_h, num_classes, in_channels,
                 voting_type="hard_softmax", seed=0):
        assert voting_type in ("hard_softmax", "soft")
        self.num_crops = num_crops
        self.crop_w = crop_w
        self.crop_h = crop_h
        self.voting_type = voting_type
        D = in_channels * crop_h * crop_w
        # inner_model parameters, deterministic init
        kw = jax.random.PRNGKey(seed + 1)
        self.w = jax.random.normal(kw, (D, num_classes), jnp.float32) * 0.02
        self.b = jnp.zeros((num_classes,), jnp.float32)

    def __call__(self, x, key):
        # Cast at the source: the materialized crop tensor is bf16 (half the bytes).
        crops = gen_crops(x.astype(jnp.bfloat16), self.num_crops,
                          self.crop_w, self.crop_h, key)
        B, K = crops.shape[:2]
        flat = crops.reshape(B, K, -1)                  # (B, K, C*ch*cw)
        return crops_vote(flat, self.w, self.b, voting_type=self.voting_type)


def _reference(flat, w, b, voting_type):
    """Pure-JAX reference (inputs may be bf16; math in f32)."""
    B, K, D = flat.shape
    logits = (flat.reshape(B * K, D).astype(jnp.float32)
              @ w.astype(jnp.float32) + b.astype(jnp.float32))
    if voting_type == "hard_softmax":
        logits = jax.nn.log_softmax(logits, axis=1)
    return logits.reshape(B, K, -1).mean(axis=1)


if __name__ == "__main__":
    key = jax.random.PRNGKey(0)
    kx, kcrop = jax.random.split(key)

    B, C, H, W = 2, 4, 16, 16
    num_crops, crop_h, crop_w, num_classes = 4, 8, 8, 16

    x = jax.random.normal(kx, (B, C, H, W), jnp.float32)

    # Same crops as the model will produce (gather is exact in bf16).
    crops = gen_crops(x, num_crops, crop_w, crop_h, kcrop)
    flat = crops.reshape(B, num_crops, -1)
    flat_bf = flat.astype(jnp.bfloat16)

    ok = True
    for vt in ("hard_softmax", "soft"):
        model = RandomCropsWrapperPallas(num_crops=num_crops, crop_w=crop_w,
                                         crop_h=crop_h, num_classes=num_classes,
                                         in_channels=C, voting_type=vt)
        out = model(x, kcrop)
        out = jax.block_until_ready(out)
        assert out.shape == (B, num_classes), out.shape

        # correctness check against pure-JAX reference on the same bf16-cast inputs
        ref = _reference(flat_bf, model.w.astype(jnp.bfloat16), model.b, vt)
        ok = ok and bool(jnp.allclose(out, ref, atol=1.5e-2, rtol=1.5e-2))

    assert ok
    print("KERNEL_OK")
</pallas_src>

<mosaic_0001>
module attributes {stable_mosaic.version = 11 : i64} {
  func.func @_vote_avg_kernel(%arg0: i32, %arg1: i32, %arg2: memref<8x256xbf16, #tpu.memory_space<vmem>>, %arg3: memref<256x128xbf16, #tpu.memory_space<vmem>>, %arg4: memref<1x128xf32, #tpu.memory_space<vmem>>, %arg5: memref<2x8xf32, #tpu.memory_space<vmem>>, %arg6: memref<2x128xf32, #tpu.memory_space<vmem>>, %arg7: memref<8x128xf32, #tpu.memory_space<vmem>>) attributes {dimension_semantics = [#tpu.dimension_semantics<parallel>, #tpu.dimension_semantics<arbitrary>], iteration_bounds = array<i64: 1, 1>, scalar_prefetch = 0 : i64, scratch_operands = 1 : i64, tpu.core_type = #tpu.core_type<tc>, window_params = [{transform_indices = @transform_0, window_bounds = array<i64: 8, 256>}, {transform_indices = @transform_1, window_bounds = array<i64: 256, 128>}, {pipeline_mode = #tpu.pipeline_mode<synchronous>, transform_indices = @transform_2, window_bounds = array<i64: 1, 128>}, {pipeline_mode = #tpu.pipeline_mode<synchronous>, transform_indices = @transform_3, window_bounds = array<i64: 2, 8>}, {transform_indices = @transform_4, window_bounds = array<i64: 2, 128>}]} {
    %c0_i32 = arith.constant 0 : i32
    %0 = arith.cmpi eq, %arg1, %c0_i32 : i32
    %1 = arith.extui %0 : i1 to i32
    %c0_i32_0 = arith.constant 0 : i32
    %2 = arith.cmpi ne, %1, %c0_i32_0 : i32
    scf.if %2 {
      %cst_10 = arith.constant 0.000000e+00 : f32
      %12 = vector.broadcast %cst_10 : f32 to vector<8x128xf32>
      %c0_11 = arith.constant 0 : index
      %c0_12 = arith.constant 0 : index
      %13 = vector.load %arg7[%c0_11, %c0_12] : memref<8x128xf32, #tpu.memory_space<vmem>>, vector<8x128xf32>
      tpu.vector_store %arg7[%c0_11, %c0_12], %12 {strides = array<i32>} : memref<8x128xf32, #tpu.memory_space<vmem>>, vector<8x128xf32>,
    } else {
    }
    %c0 = arith.constant 0 : index
    %c0_1 = arith.constant 0 : index
    %3 = vector.load %arg7[%c0, %c0_1] : memref<8x128xf32, #tpu.memory_space<vmem>>, vector<8x128xf32>
    %c0_2 = arith.constant 0 : index
    %c0_3 = arith.constant 0 : index
    %4 = vector.load %arg2[%c0_2, %c0_3] : memref<8x256xbf16, #tpu.memory_space<vmem>>, vector<8x256xbf16>
    %c0_4 = arith.constant 0 : index
    %c0_5 = arith.constant 0 : index
    %5 = vector.load %arg3[%c0_4, %c0_5] : memref<256x128xbf16, #tpu.memory_space<vmem>>, vector<256x128xbf16>
    %cst = arith.constant dense<0.000000e+00> : vector<8x128xf32>
    %6 = tpu.matmul %4, %5, %cst {dimension_numbers = #tpu.dot_dimension_numbers<[1], [0], [0], [1], [0, 0, 1, 1], [], []>} : vector<8x256xbf16>, vector<256x128xbf16>, vector<8x128xf32> -> vector<8x128xf32>
    %7 = arith.addf %3, %6 : vector<8x128xf32>
    %c0_6 = arith.constant 0 : index
    %c0_7 = arith.constant 0 : index
    %8 = vector.load %arg7[%c0_6, %c0_7] : memref<8x128xf32, #tpu.memory_space<vmem>>, vector<8x128xf32>
    tpu.vector_store %arg7[%c0_6, %c0_7], %7 {strides = array<i32>} : memref<8x128xf32, #tpu.memory_space<vmem>>, vector<8x128xf32>,
    %c0_i32_8 = arith.constant 0 : i32
    %9 = arith.cmpi eq, %arg1, %c0_i32_8 : i32
    %10 = arith.extui %9 : i1 to i32
    %c0_i32_9 = arith.constant 0 : i32
    %11 = arith.cmpi ne, %10, %c0_i32_9 : i32
    scf.if %11 {
      %c0_10 = arith.constant 0 : index
      %c0_11 = arith.constant 0 : index
      %12 = vector.load %arg7[%c0_10, %c0_11] : memref<8x128xf32, #tpu.memory_space<vmem>>, vector<8x128xf32>
      %c0_12 = arith.constant 0 : index
      %c0_13 = arith.constant 0 : index
      %13 = vector.load %arg4[%c0_12, %c0_13] : memref<1x128xf32, #tpu.memory_space<vmem>>, vector<1x128xf32>
      %14 = vector.broadcast %13 : vector<1x128xf32> to vector<8x128xf32>
      %15 = arith.addf %12, %14 : vector<8x128xf32>
      %cst_14 = arith.constant dense<0xFF800000> : vector<8xf32>
      %16 = vector.multi_reduction <maximumf>, %15, %cst_14 [1] : vector<8x128xf32> to vector<8xf32>
      %17 = vector.shape_cast %16 : vector<8xf32> to vector<8x1xf32>
      %18 = vector.broadcast %17 : vector<8x1xf32> to vector<8x128xf32>
      %19 = arith.subf %15, %18 : vector<8x128xf32>
      %20 = math.exp %19 : vector<8x128xf32>
      %cst_15 = arith.constant dense<0.000000e+00> : vector<8xf32>
      %21 = vector.multi_reduction <add>, %20, %cst_15 [1] : vector<8x128xf32> to vector<8xf32>
      %22 = vector.shape_cast %21 : vector<8xf32> to vector<8x1xf32>
      %23 = math.log %22 : vector<8x1xf32>
      %24 = vector.broadcast %23 : vector<8x1xf32> to vector<8x128xf32>
      %25 = arith.subf %19, %24 : vector<8x128xf32>
      %c0_16 = arith.constant 0 : index
      %c0_17 = arith.constant 0 : index
      %26 = vector.load %arg5[%c0_16, %c0_17] : memref<2x8xf32, #tpu.memory_space<vmem>>, vector<2x8xf32>
      %cst_18 = arith.constant dense<0.000000e+00> : vector<2x128xf32>
      %27 = tpu.matmul %26, %25, %cst_18 {dimension_numbers = #tpu.dot_dimension_numbers<[1], [0], [0], [1], [0, 0, 1, 1], [], []>} : vector<2x8xf32>, vector<8x128xf32>, vector<2x128xf32> -> vector<2x128xf32>
      %c0_19 = arith.constant 0 : index
      %c0_20 = arith.constant 0 : index
      %28 = vector.load %arg6[%c0_19, %c0_20] : memref<2x128xf32, #tpu.memory_space<vmem>>, vector<2x128xf32>
      tpu.vector_store %arg6[%c0_19, %c0_20], %27 {strides = array<i32>} : memref<2x128xf32, #tpu.memory_space<vmem>>, vector<2x128xf32>,
    } else {
    }
    return
  }
  func.func @transform_0(%arg0: i32, %arg1: i32) -> (i32, i32) {
    %c0_i32 = arith.constant 0 : i32
    return %arg0, %arg1 : i32, i32
  }
  func.func @transform_1(%arg0: i32, %arg1: i32) -> (i32, i32) {
    %c0_i32 = arith.constant 0 : i32
    %c0_i32_0 = arith.constant 0 : i32
    return %arg1, %c0_i32 : i32, i32
  }
  func.func @transform_2(%arg0: i32, %arg1: i32) -> (i32, i32) {
    %c0_i32 = arith.constant 0 : i32
    %c0_i32_0 = arith.constant 0 : i32
    %c0_i32_1 = arith.constant 0 : i32
    return %c0_i32, %c0_i32_0 : i32, i32
  }
  func.func @transform_3(%arg0: i32, %arg1: i32) -> (i32, i32) {
    %c0_i32 = arith.constant 0 : i32
    %c0_i32_0 = arith.constant 0 : i32
    %c0_i32_1 = arith.constant 0 : i32
    return %c0_i32, %c0_i32_0 : i32, i32
  }
  func.func @transform_4(%arg0: i32, %arg1: i32) -> (i32, i32) {
    %c0_i32 = arith.constant 0 : i32
    %c0_i32_0 = arith.constant 0 : i32
    return %arg0, %c0_i32 : i32, i32
  }
}

</mosaic_0001>

<llo_original>
// kernel: tpu_custom_call.1
$region0: #{tpu_custom_call.1}
  #allocation0 [shape = 'u32[]', space=smem, size = 0x4, offset = 0x4, fixed_abs, tag = 'smem constant byte address 0x4 - core index']
  #allocation1 [shape = 'u32[72,128]{1,0:T(1,128)}', space=vmem, size = 0x9000, scoped, tag = 'internal scratch']
  #allocation2 [shape = 'f32[8,128]{1,0:T(8,128)}', space=vmem, size = 0x1000, scoped, tag = 'scratch operand']
  %s0 = inlined_call_operand.hbm [shape: bf16[8,256], index: 0, kind: input, shape index: {}]
  %s1 = inlined_call_operand.hbm [shape: bf16[256,128], index: 1, kind: input, shape index: {}]
  %s2 = inlined_call_operand.hbm [shape: f32[1,128], index: 2, kind: input, shape index: {}]
  %s3 = inlined_call_operand.vmem [shape: f32[2,8], index: 3, kind: input, shape index: {}]
  %s4 = inlined_call_operand.hbm [shape: f32[2,128], index: 4, kind: output, shape index: {}]
  %s5 = sld [smem:[#allocation0]]
  $region46: #{tpu_custom_call.1} parent=0
    _
  %s7 = ssub.s32 1, %s5
  %s8 = scalar_select 0, %s7, %s5
  $region1: #{tpu_custom_call.1} parent=0
    #allocation3 [shape = 'u8[4096]{0}', space=vmem, size = 0x1000, scoped, tag = 'input window, operand 0, single buffered']
    #allocation4 [shape = 's32[1]{0}', space=sflag, size = 0x4, scoped, tag = 'scoped memory for tpu_custom_call.1']
    #allocation5 [shape = 's32[1]{0}', space=sflag, size = 0x4, scoped, tag = 'scoped memory for tpu_custom_call.1']
    #allocation6 [shape = 'u8[65536]{0}', space=vmem, size = 0x10000, scoped, tag = 'input window, operand 1, single buffered']
    #allocation7 [shape = 's32[1]{0}', space=sflag, size = 0x4, scoped, tag = 'scoped memory for tpu_custom_call.1']
    #allocation8 [shape = 'u8[512]{0}', space=vmem, size = 0x400, scoped, tag = 'input window, operand 2, single buffered']
    #allocation9 [shape = 'u8[1024]{0}', space=vmem, size = 0x400, scoped, tag = 'output window, operand 0, single buffered']
    %9 = vsyncpa [#allocation4], 0
    %10 = vsyncpa [#allocation7], 0
    %11 = vsyncpa [#allocation5], 0
    // Predicated region
    $region2: #{tpu_custom_call.1} parent=1 // pred_check
      _
    $region3: #{tpu_custom_call.1} parent=1 // pred_check_branch
      %13 = sbr.rel (0) target = $region5
    $region4: #{tpu_custom_call.1} parent=1 // pred_region
      %15 = vsyncadd [#allocation4], 0
      %s17 = sshll.u32 %s0, 4
      %s18 = int_to_ptr.hbm [resolvable:$true] %s17
      %s19 = sshll.u32 [#allocation3], 4
      %s20 = int_to_ptr.vmem [resolvable:$true] %s19
      %22 = dma.hbm_to_vmem [thread:$0]  %s18, 128, %s20, [#allocation4]
    $region5: #{tpu_custom_call.1} parent=1 // pred_fallthru
      _
    // Predicated region
    $region6: #{tpu_custom_call.1} parent=1 // pred_check
      _
    $region7: #{tpu_custom_call.1} parent=1 // pred_check_branch
      %24 = sbr.rel (0) target = $region9
    $region8: #{tpu_custom_call.1} parent=1 // pred_region
      %26 = vsyncadd [#allocation7], 0
      %s27 = sshll.u32 %s1, 4
      %s28 = int_to_ptr.hbm [resolvable:$true] %s27
      %s29 = sshll.u32 [#allocation6], 4
      %s30 = int_to_ptr.vmem [resolvable:$true] %s29
      %35 = dma.hbm_to_vmem [thread:$0]  %s28, 2048, %s30, [#allocation7], 64, 64, 4
    $region9: #{tpu_custom_call.1} parent=1 // pred_fallthru
      _
    // Predicated region
    $region10: #{tpu_custom_call.1} parent=1 // pred_check
      _
    $region11: #{tpu_custom_call.1} parent=1 // pred_check_branch
      %37 = sbr.rel (0) target = $region13
    $region12: #{tpu_custom_call.1} parent=1 // pred_region
      %39 = vsyncadd [#allocation7], 0
      %s41 = sshll.u32 %s2, 4
      %s42 = int_to_ptr.hbm [resolvable:$true] %s41
      %s43 = sshll.u32 [#allocation8], 4
      %s44 = int_to_ptr.vmem [resolvable:$true] %s43
      %46 = dma.hbm_to_vmem [thread:$0]  %s42, 16, %s44, [#allocation7]
    $region13: #{tpu_custom_call.1} parent=1 // pred_fallthru
      _
    // Predicated region
    $region14: #{tpu_custom_call.1} parent=1 // pred_check
      _
    $region15: #{tpu_custom_call.1} parent=1 // pred_check_branch
      %48 = sbr.rel (0) target = $region17
    $region16: #{tpu_custom_call.1} parent=1 // pred_region
      _
    $region17: #{tpu_custom_call.1} parent=1 // pred_fallthru
      _
    // Predicated region
    $region18: #{tpu_custom_call.1} parent=1 // pred_check
      _
    $region19: #{tpu_custom_call.1} parent=1 // pred_check_branch
      %50 = sbr.rel (0) target = $region21
    $region20: #{tpu_custom_call.1} parent=1 // pred_region
      %52 = dma.done [#allocation4], 128
    $region21: #{tpu_custom_call.1} parent=1 // pred_fallthru
      _
    // Predicated region
    $region22: #{tpu_custom_call.1} parent=1 // pred_check
      _
    $region23: #{tpu_custom_call.1} parent=1 // pred_check_branch
      %54 = sbr.rel (0) target = $region25
    $region24: #{tpu_custom_call.1} parent=1 // pred_region
      %56 = dma.done [#allocation7], 2048
    $region25: #{tpu_custom_call.1} parent=1 // pred_fallthru
      _
    // Predicated region
    $region26: #{tpu_custom_call.1} parent=1 // pred_check
      _
    $region27: #{tpu_custom_call.1} parent=1 // pred_check_branch
      %58 = sbr.rel (0) target = $region29
    $region28: #{tpu_custom_call.1} parent=1 // pred_region
      %60 = dma.done [#allocation7], 16
    $region29: #{tpu_custom_call.1} parent=1 // pred_fallthru
      _
    %p61 = scmp.eq.s32.totalorder 0, 0
    // Predicated region
    $region30: #{tpu_custom_call.1} parent=1 // pred_check
      %p62 = pneg %p61
    $region31: #{tpu_custom_call.1} parent=1 // pred_check_branch
      %64 = sbr.rel (%p62) target = $region33
    $region32: #{tpu_custom_call.1} parent=1 // pred_region
      %65 = vst [vmem:[#allocation2] sm:$0xff] 0.0
    $region33: #{tpu_custom_call.1} parent=1 // pred_fallthru
      _
    %v66 = vld [vmem:[#allocation2] sm:$0xff]
    %v67 = vld [vmem:[#allocation3] sm:$0xff]
    %v68 = vld [vmem:[#allocation6] sm:$0xf]
    %v69 = vld [vmem:[#allocation6 + $0x4] sm:$0xf]
    %v70 = vld [vmem:[#allocation6 + $0x8] sm:$0xf]
    %v71 = vld [vmem:[#allocation6 + $0xc] sm:$0xf]
    %v72 = vld [vmem:[#allocation6 + $0x10] sm:$0xf]
    %v73 = vld [vmem:[#allocation6 + $0x14] sm:$0xf]
    %v74 = vld [vmem:[#allocation6 + $0x18] sm:$0xf]
    %v75 = vld [vmem:[#allocation6 + $0x1c] sm:$0xf]
    %v76 = vld [vmem:[#allocation6 + $0x20] sm:$0xf]
    %v77 = vld [vmem:[#allocation6 + $0x24] sm:$0xf]
    %v78 = vld [vmem:[#allocation6 + $0x28] sm:$0xf]
    %v79 = vld [vmem:[#allocation6 + $0x2c] sm:$0xf]
    %v80 = vld [vmem:[#allocation6 + $0x30] sm:$0xf]
    %v81 = vld [vmem:[#allocation6 + $0x34] sm:$0xf]
    %v82 = vld [vmem:[#allocation6 + $0x38] sm:$0xf]
    %v83 = vld [vmem:[#allocation6 + $0x3c] sm:$0xf]
    %v84 = vld [vmem:[#allocation6 + $0x40] sm:$0xf]
    %v85 = vld [vmem:[#allocation6 + $0x44] sm:$0xf]
    %v86 = vld [vmem:[#allocation6 + $0x48] sm:$0xf]
    %v87 = vld [vmem:[#allocation6 + $0x4c] sm:$0xf]
    %v88 = vld [vmem:[#allocation6 + $0x50] sm:$0xf]
    %v89 = vld [vmem:[#allocation6 + $0x54] sm:$0xf]
    %v90 = vld [vmem:[#allocation6 + $0x58] sm:$0xf]
    %v91 = vld [vmem:[#allocation6 + $0x5c] sm:$0xf]
    %v92 = vld [vmem:[#allocation6 + $0x60] sm:$0xf]
    %v93 = vld [vmem:[#allocation6 + $0x64] sm:$0xf]
    %v94 = vld [vmem:[#allocation6 + $0x68] sm:$0xf]
    %v95 = vld [vmem:[#allocation6 + $0x6c] sm:$0xf]
    %v96 = vld [vmem:[#allocation6 + $0x70] sm:$0xf]
    %v97 = vld [vmem:[#allocation6 + $0x74] sm:$0xf]
    %v98 = vld [vmem:[#allocation6 + $0x78] sm:$0xf]
    %v99 = vld [vmem:[#allocation6 + $0x7c] sm:$0xf]
    %v101 = vunpack.c.l.b16 %v67
    %v102 = vunpack.c.h.b16 %v67
    %v103 = vpack.c.b16 %v101, %v101
    %v104 = vpack.c.b16 %v102, %v102
    %v139 = vunpack.c.l.b16 %v68
    %v140 = vunpack.c.l.b16 %v69
    %v141 = vunpack.c.l.b16 %v70
    %v142 = vunpack.c.l.b16 %v71
    %v143 = vunpack.c.l.b16 %v72
    %v144 = vunpack.c.l.b16 %v73
    %v145 = vunpack.c.l.b16 %v74
    %v146 = vunpack.c.l.b16 %v75
    %v147 = vunpack.c.l.b16 %v76
    %v148 = vunpack.c.l.b16 %v77
    %v149 = vunpack.c.l.b16 %v78
    %v150 = vunpack.c.l.b16 %v79
    %v151 = vunpack.c.l.b16 %v80
    %v152 = vunpack.c.l.b16 %v81
    %v153 = vunpack.c.l.b16 %v82
    %v154 = vunpack.c.l.b16 %v83
    %v155 = vunpack.c.l.b16 %v84
    %v156 = vunpack.c.l.b16 %v85
    %v157 = vunpack.c.l.b16 %v86
    %v158 = vunpack.c.l.b16 %v87
    %v159 = vunpack.c.l.b16 %v88
    %v160 = vunpack.c.l.b16 %v89
    %v161 = vunpack.c.l.b16 %v90
    %v162 = vunpack.c.l.b16 %v91
    %v163 = vunpack.c.l.b16 %v92
    %v164 = vunpack.c.l.b16 %v93
    %v165 = vunpack.c.l.b16 %v94
    %v166 = vunpack.c.l.b16 %v95
    %v167 = vunpack.c.l.b16 %v96
    %v168 = vunpack.c.l.b16 %v97
    %v169 = vunpack.c.l.b16 %v98
    %v170 = vunpack.c.l.b16 %v99
    %v171 = vpack.c.b16 %v140, %v139
    %v172 = vpack.c.b16 %v142, %v141
    %v173 = vpack.c.b16 %v144, %v143
    %v174 = vpack.c.b16 %v146, %v145
    %v175 = vpack.c.b16 %v148, %v147
    %v176 = vpack.c.b16 %v150, %v149
    %v177 = vpack.c.b16 %v152, %v151
    %v178 = vpack.c.b16 %v154, %v153
    %v179 = vpack.c.b16 %v156, %v155
    %v180 = vpack.c.b16 %v158, %v157
    %v181 = vpack.c.b16 %v160, %v159
    %v182 = vpack.c.b16 %v162, %v161
    %v183 = vpack.c.b16 %v164, %v163
    %v184 = vpack.c.b16 %v166, %v165
    %v185 = vpack.c.b16 %v168, %v167
    %v186 = vpack.c.b16 %v170, %v169
    %203 = vmatpush.bf16.msra.mxu0 %v178
    %204 = vmatpush.bf16.msra.mxu0 %v177
    %205 = vmatpush.bf16.msra.mxu0 %v176
    %206 = vmatpush.bf16.msra.mxu0 %v175
    %207 = vmatpush.bf16.msra.mxu0 %v174
    %208 = vmatpush.bf16.msra.mxu0 %v173
    %209 = vmatpush.bf16.msra.mxu0 %v172
    %210 = vmatpush.bf16.msra.mxu0 %v171
    %211 = vmatmul.bf16.gmra.mxu0 %v103
    %v212 = vpop.f32.mrf.mxu0
    %v213 = vadd.f32 0.0, %v212
    %v214 = vpop.f32.mrf.mxu0
    %215 = vdwg.mxu0
    %216 = vmatpush.bf16.msra.mxu0 %v186
    %217 = vmatpush.bf16.msra.mxu0 %v185
    %218 = vmatpush.bf16.msra.mxu0 %v184
    %219 = vmatpush.bf16.msra.mxu0 %v183
    %220 = vmatpush.bf16.msra.mxu0 %v182
    %221 = vmatpush.bf16.msra.mxu0 %v181
    %222 = vmatpush.bf16.msra.mxu0 %v180
    %223 = vmatpush.bf16.msra.mxu0 %v179
    %224 = vmatmul.bf16.gmra.mxu0 %v104
    %v225 = vpop.f32.mrf.mxu0
    %v226 = vadd.f32 %v213, %v225
    %v227 = vpop.f32.mrf.mxu0
    %228 = vdwg.mxu0
    %v229 = vadd.f32 %v66, %v226
    %230 = vst [vmem:[#allocation2] sm:$0xff] %v229
    // Predicated region
    $region34: #{tpu_custom_call.1} parent=1 // pred_check
      %p231 = pneg %p61
    $region35: #{tpu_custom_call.1} parent=1 // pred_check_branch
      %233 = sbr.rel (%p231) target = $region37
    $region36: #{tpu_custom_call.1} parent=1 // pred_region
      %v234 = vld [vmem:[#allocation2] sm:$0xff]
      %v235 = vld [vmem:[#allocation8] sm:$0x1]
      %v237 = vperm.slane %v235, 0
      %v239 = vadd.f32 %v234, %v237
      %240 = vmax.xlane.f32.xlu0 %v239
      %v241 = vpop.xlane.xlu0 %240
      %v242 = vsub.f32 %v239, %v241
      %v243 = vmul.f32 %v242, 1.442695
      %v244 = vpow.pop %v243
      %245 = vadd.xlane.f32.xlu0 %v244
      %v246 = vpop.xlane.xlu0 %245
      %v247 = vlog2.pop %v246
      %v248 = vmul.f32 %v247, 0.6931472
      %v249 = vsub.f32 %v242, %v248
      %v250 = vld [vmem:[%s3] sm:$0x3]
      %vm251 = vcmask 64512
      %v253 = vsel %vm251, %v250, 0
      %255 = vmatpush.msra.mxu0 0.0
      %256 = vmatpush.msra.mxu0 0.0
      %257 = vmatpush.msra.mxu0 0.0
      %258 = vmatpush.msra.mxu0 0.0
      %259 = vmatpush.msra.mxu0 0.0
      %260 = vmatpush.msra.mxu0 0.0
      %261 = vmatpush.msra.mxu0 0.0
      %262 = vmatpush.msra.mxu0 0.0
      %263 = vmatpush.msra.mxu0 0.0
      %264 = vmatpush.msra.mxu0 0.0
      %265 = vmatpush.msra.mxu0 0.0
      %266 = vmatpush.msra.mxu0 0.0
      %267 = vmatpush.msra.mxu0 0.0
      %268 = vmatpush.msra.mxu0 0.0
      %269 = vmatpush.msra.mxu0 0.0
      %270 = vmatpush.msra.mxu0 %v249
      %271 = vmatmul.f32.gmra.mxu0 %v253
      %v272 = vpop.f32.mrf.mxu0
      %v273 = vadd.f32 0.0, %v272
      %274 = vdwg.mxu0
      %275 = vst [vmem:[#allocation9] sm:$0x3] %v273
    $region37: #{tpu_custom_call.1} parent=1 // pred_fallthru
      _
    // Predicated region
    $region38: #{tpu_custom_call.1} parent=1 // pred_check
      _
    $region39: #{tpu_custom_call.1} parent=1 // pred_check_branch
      %277 = sbr.rel (0) target = $region41
    $region40: #{tpu_custom_call.1} parent=1 // pred_region
      %279 = vsyncadd [#allocation5], 0
      %s281 = sshll.u32 [#allocation9], 4
      %s282 = int_to_ptr.vmem [resolvable:$true] %s281
      %s283 = sshll.u32 %s4, 4
      %s284 = int_to_ptr.hbm [resolvable:$true] %s283
      %286 = dma.vmem_to_hbm [thread:$0]  %s282, 32, %s284, [#allocation5]
    $region41: #{tpu_custom_call.1} parent=1 // pred_fallthru
      _
    // Predicated region
    $region42: #{tpu_custom_call.1} parent=1 // pred_check
      _
    $region43: #{tpu_custom_call.1} parent=1 // pred_check_branch
      %288 = sbr.rel (0) target = $region45
    $region44: #{tpu_custom_call.1} parent=1 // pred_region
      %290 = dma.done [#allocation5], 32
    $region45: #{tpu_custom_call.1} parent=1 // pred_fallthru
      _
    %291 = vsyncpa [#allocation4], 1
    %292 = vsyncpa [#allocation7], 1
    %293 = vsyncpa [#allocation5], 1

</llo_original>
